<compile_context>
chip_gen: v7x
topology: tpu7x:2x2x1
jax: 0.10.0
libtpu: 0.0.40
codegen_flags: <defaults>
</compile_context>

<pallas_src>
import functools

import jax
import jax.numpy as jnp
from jax import lax
from jax.experimental import pallas as pl
from jax.experimental.pallas import tpu as pltpu


def _ce_top1_kernel(x_ref, w_ref, b_ref, lab_ref, out_ref,
                    m_sc, l_sc, ll_sc, idx_sc,
                    *, n_classes, nc_per_split, classes_padded):
    # x_ref:   (B, Dp)     activations (whole batch, VMEM resident)
    # w_ref:   (TC, Dp)    nn.Linear weight rows for this class tile (not transposed)
    # b_ref:   (1, TC)     bias slice
    # lab_ref: (B, 1)      int32 labels
    # out_ref: (1, B, 128) per-split per-row stats:
    #          lane0 = running max m, lane1 = sum exp(s - m), lane2 = label logit,
    #          lane3 = argmax class id (as f32); remaining lanes zero.
    # NOTE: program_id / num_programs must stay OUT of pl.when bodies.
    sp = pl.program_id(0)                 # class split (parallel across TensorCores)
    ci = pl.program_id(1)                 # class tile inside the split (reduction)
    last_ci = pl.num_programs(1) - 1

    @pl.when(ci == 0)
    def _init():
        m_sc[...] = jnp.full_like(m_sc, -jnp.inf)
        l_sc[...] = jnp.zeros_like(l_sc)
        ll_sc[...] = jnp.zeros_like(ll_sc)
        idx_sc[...] = jnp.zeros_like(idx_sc)

    # MXU: (B, Dp) x (TC, Dp) contracted on Dp -> (B, TC); bf16 operands, f32 accumulate.
    s = lax.dot_general(x_ref[...], w_ref[...],
                        dimension_numbers=(((1,), (1,)), ((), ())),
                        preferred_element_type=jnp.float32)
    s = s + b_ref[...].astype(jnp.float32)

    nrows, tc = s.shape
    gci = (sp * nc_per_split + ci) * tc + lax.broadcasted_iota(jnp.int32, (nrows, tc), 1)
    if classes_padded:                    # static: only emitted when C doesn't tile exactly
        s = jnp.where(gci < n_classes, s, -jnp.inf)

    labels = lab_ref[...]                 # (B, 1) int32

    # Label-logit gather (classes outside this tile contribute 0).
    ll_sc[...] += jnp.sum(jnp.where(gci == labels, s, 0.0), axis=-1, keepdims=True)

    # Tile max + first-occurrence argmax candidate within the tile.
    tile_max = jnp.max(s, axis=-1, keepdims=True)                     # (B, 1)
    tile_pred = jnp.min(jnp.where(s == tile_max, gci, n_classes),
                        axis=-1, keepdims=True)                       # (B, 1) int32

    # Running first-occurrence argmax: the online-LSE running max doubles as best value.
    m_old = m_sc[...]
    take = tile_max > m_old               # strict '>' keeps the earliest class on ties
    idx_sc[...] = jnp.where(take, tile_pred, idx_sc[...])

    # Online logsumexp across class tiles.
    m_new = jnp.maximum(m_old, tile_max)
    alpha = jnp.exp(m_old - m_new)
    l_sc[...] = alpha * l_sc[...] + jnp.sum(jnp.exp(s - m_new), axis=-1, keepdims=True)
    m_sc[...] = m_new

    @pl.when(ci == last_ci)
    def _finalize():
        # Only written on the last class tile; Pallas writes the block back when the
        # (split-indexed) output block changes / at grid end, so the final HBM value
        # is always this finalized block.
        lane = lax.broadcasted_iota(jnp.int32, (nrows, 128), 1)
        packed = jnp.where(lane == 0, m_sc[...],
                 jnp.where(lane == 1, l_sc[...],
                 jnp.where(lane == 2, ll_sc[...],
                 jnp.where(lane == 3, idx_sc[...].astype(jnp.float32), 0.0))))
        out_ref[0] = packed


def _round_up(v, m):
    return (v + m - 1) // m * m


def _vmem_budget_bytes():
    """~75% of per-core VMEM: ~48 MiB on v7x (64 MiB), ~96 MiB on v5e/v6e (128 MiB)."""
    phys = 64 * 1024 * 1024              # conservative default (v7x per-TC VMEM)
    try:
        phys = int(getattr(pltpu.get_tpu_info(), "vmem_capacity_bytes", phys))
    except Exception:
        pass
    return max(32 * 1024 * 1024, (phys * 3) // 4)


@functools.partial(jax.jit, static_argnames=("mxu_dtype", "max_tc"))
def loss_function_forward(x, weight, bias, label, *, mxu_dtype=jnp.bfloat16, max_tc=8192):
    """Pallas equivalent of LossFunction.forward(x, label) -> (nloss, prec1)."""
    B, D = x.shape
    C, D2 = weight.shape
    assert D == D2, "weight must be (nClasses, nOut)"

    # bf16 operands for the MXU peak path; all softmax math stays f32 in-kernel.
    x_c = x.astype(mxu_dtype)
    w_c = weight.astype(mxu_dtype)

    # Lane-dense operands: pad a tiny hidden dim up to one full 128-lane vreg.
    d_pad = D if D >= 128 else 128
    if d_pad != D:
        x_c = jnp.pad(x_c, ((0, 0), (0, d_pad - D)))
        w_c = jnp.pad(w_c, ((0, 0), (0, d_pad - D)))

    bias2 = bias.reshape(1, C).astype(jnp.float32)
    lab2 = label.reshape(B, 1).astype(jnp.int32)

    # --- class tile size from a per-generation VMEM budget --------------------------
    budget = _vmem_budget_bytes()
    bw = jnp.dtype(mxu_dtype).itemsize
    fixed = 2 * B * d_pad * bw                     # x (double-buffered worst case)
    fixed += 8 * B * 4 + 2 * B * 128 * 4           # labels + per-row scratch + out block
    per_col = 2 * d_pad * bw + 8 + 8 * B * 4       # W dbuf + bias dbuf + f32 temporaries
    tc_fit = max(128, ((budget - fixed) // per_col) // 128 * 128)
    # keep >= ~4 class tiles once C is large so the 2-way core split / pipelining exist
    tc_cap = max(512, _round_up(pl.cdiv(C, 4), 128))
    TC = int(min(_round_up(C, 128), max_tc, tc_fit, tc_cap))

    nc_total = pl.cdiv(C, TC)                      # class tiles overall
    nsplit = 2 if nc_total >= 2 else 1             # leading "parallel" axis (v7x megacore)
    ncps = pl.cdiv(nc_total, nsplit)               # class tiles per split
    classes_padded = (nsplit * ncps * TC) != C

    def w_map(sp, ci):                             # clamp: duplicated tail tiles are masked
        return (jnp.minimum(sp * ncps + ci, nc_total - 1), 0)

    def b_map(sp, ci):
        return (0, jnp.minimum(sp * ncps + ci, nc_total - 1))

    cost = pl.CostEstimate(
        flops=2 * B * d_pad * C,
        transcendentals=B * C,
        bytes_accessed=(C * d_pad + B * d_pad) * bw + C * 4 + B * 4
        + nsplit * B * 128 * 4,                    # weight is streamed exactly once
    )

    kernel = functools.partial(_ce_top1_kernel, n_classes=C, nc_per_split=ncps,
                               classes_padded=classes_padded)

    stats = pl.pallas_call(
        kernel,
        out_shape=jax.ShapeDtypeStruct((nsplit, B, 128), jnp.float32),
        grid=(nsplit, ncps),
        in_specs=[
            pl.BlockSpec((B, d_pad), lambda sp, ci: (0, 0)),   # x: fetched once, resident
            pl.BlockSpec((TC, d_pad), w_map),                  # weight rows (no transpose)
            pl.BlockSpec((1, TC), b_map),                      # bias slice
            pl.BlockSpec((B, 1), lambda sp, ci: (0, 0)),       # labels
        ],
        out_specs=pl.BlockSpec((1, B, 128), lambda sp, ci: (sp, 0, 0)),
        scratch_shapes=[
            pltpu.VMEM((B, 1), jnp.float32),   # running max m
            pltpu.VMEM((B, 1), jnp.float32),   # running sum-exp l
            pltpu.VMEM((B, 1), jnp.float32),   # label logit
            pltpu.VMEM((B, 1), jnp.int32),     # running argmax class id
        ],
        compiler_params=pltpu.CompilerParams(
            dimension_semantics=("parallel", "arbitrary"),
            vmem_limit_bytes=int(budget),
        ),
        cost_estimate=cost,
    )(x_c, w_c, bias2, lab2)

    # --- tiny cross-split merge (nsplit <= 2, all O(B)) ------------------------------
    m = stats[..., 0]                              # (nsplit, B)
    l = stats[..., 1]
    ll = stats[..., 2]
    pred = stats[..., 3].astype(jnp.int32)

    m_max = jnp.max(m, axis=0)
    lse = m_max + jnp.log(jnp.sum(jnp.exp(m - m_max) * l, axis=0))
    nll = lse - jnp.sum(ll, axis=0)
    best_split = jnp.argmax(m, axis=0)             # ties -> split 0 = lower class ids
    pred1 = jnp.take_along_axis(pred, best_split[None, :], axis=0)[0]

    loss = jnp.mean(nll)
    prec1 = 100.0 * jnp.mean((pred1 == lab2[:, 0]).astype(jnp.float32))
    # TODO(synk): ignore_index / label_smoothing not handled (torch defaults here).
    return loss.astype(jnp.float32), prec1.astype(jnp.float32)


if __name__ == "__main__":
    # Small shapes consistent with the module: nOut (hidden) = 32, nClasses = 128, batch = 8.
    B, nOut, nClasses = 8, 32, 128

    key = jax.random.PRNGKey(0)
    kx, kw, kb, kl = jax.random.split(key, 4)

    x = jax.random.normal(kx, (B, nOut), dtype=jnp.float32)
    bound = 1.0 / (nOut ** 0.5)                    # nn.Linear-style init
    weight = jax.random.uniform(kw, (nClasses, nOut), jnp.float32, -bound, bound)
    bias = jax.random.uniform(kb, (nClasses,), jnp.float32, -bound, bound)
    label = jax.random.randint(kl, (B,), 0, nClasses, dtype=jnp.int32)

    nloss, prec1 = loss_function_forward(x, weight, bias, label)
    jax.block_until_ready((nloss, prec1))

    # Pure-JAX reference with the same bf16 matmul precision as the kernel's MXU path.
    logits = jnp.dot(x.astype(jnp.bfloat16), weight.astype(jnp.bfloat16).T,
                     preferred_element_type=jnp.float32) + bias
    lse_ref = jax.scipy.special.logsumexp(logits, axis=-1)
    loss_ref = jnp.mean(lse_ref - logits[jnp.arange(B), label])
    prec_ref = 100.0 * jnp.mean((jnp.argmax(logits, axis=-1) == label).astype(jnp.float32))

    assert jnp.allclose(nloss, loss_ref, rtol=2e-3, atol=2e-3), (nloss, loss_ref)
    assert jnp.allclose(prec1, prec_ref, rtol=1e-4, atol=1e-4), (prec1, prec_ref)

    print("KERNEL_OK")
</pallas_src>

<mosaic_0001>
module attributes {stable_mosaic.version = 11 : i64} {
  func.func @_ce_top1_kernel(%arg0: i32, %arg1: i32, %arg2: memref<8x128xbf16, #tpu.memory_space<vmem>>, %arg3: memref<128x128xbf16, #tpu.memory_space<vmem>>, %arg4: memref<1x128xf32, #tpu.memory_space<vmem>>, %arg5: memref<8x1xi32, #tpu.memory_space<vmem>>, %arg6: memref<1x8x128xf32, #tpu.memory_space<vmem>>, %arg7: memref<8x1xf32, #tpu.memory_space<vmem>>, %arg8: memref<8x1xf32, #tpu.memory_space<vmem>>, %arg9: memref<8x1xf32, #tpu.memory_space<vmem>>, %arg10: memref<8x1xi32, #tpu.memory_space<vmem>>) attributes {dimension_semantics = [#tpu.dimension_semantics<parallel>, #tpu.dimension_semantics<arbitrary>], iteration_bounds = array<i64: 1, 1>, scalar_prefetch = 0 : i64, scratch_operands = 4 : i64, tpu.core_type = #tpu.core_type<tc>, window_params = [{pipeline_mode = #tpu.pipeline_mode<synchronous>, transform_indices = @transform_0, window_bounds = array<i64: 8, 128>}, {transform_indices = @transform_1, window_bounds = array<i64: 128, 128>}, {transform_indices = @transform_2, window_bounds = array<i64: 1, 128>}, {pipeline_mode = #tpu.pipeline_mode<synchronous>, transform_indices = @transform_3, window_bounds = array<i64: 8, 1>}, {transform_indices = @transform_4, window_bounds = array<i64: 1, 8, 128>}]} {
    %c0_i32 = arith.constant 0 : i32
    %0 = arith.cmpi eq, %arg1, %c0_i32 : i32
    %1 = arith.extui %0 : i1 to i32
    %c0_i32_0 = arith.constant 0 : i32
    %2 = arith.cmpi ne, %1, %c0_i32_0 : i32
    scf.if %2 {
      %cst_32 = arith.constant 0xFF800000 : f32
      %54 = vector.broadcast %cst_32 : f32 to vector<8x1xf32>
      %c0_33 = arith.constant 0 : index
      %c0_34 = arith.constant 0 : index
      %55 = vector.load %arg7[%c0_33, %c0_34] : memref<8x1xf32, #tpu.memory_space<vmem>>, vector<8x1xf32>
      tpu.vector_store %arg7[%c0_33, %c0_34], %54 {strides = array<i32>} : memref<8x1xf32, #tpu.memory_space<vmem>>, vector<8x1xf32>,
      %cst_35 = arith.constant 0.000000e+00 : f32
      %56 = vector.broadcast %cst_35 : f32 to vector<8x1xf32>
      %c0_36 = arith.constant 0 : index
      %c0_37 = arith.constant 0 : index
      %57 = vector.load %arg8[%c0_36, %c0_37] : memref<8x1xf32, #tpu.memory_space<vmem>>, vector<8x1xf32>
      tpu.vector_store %arg8[%c0_36, %c0_37], %56 {strides = array<i32>} : memref<8x1xf32, #tpu.memory_space<vmem>>, vector<8x1xf32>,
      %cst_38 = arith.constant 0.000000e+00 : f32
      %58 = vector.broadcast %cst_38 : f32 to vector<8x1xf32>
      %c0_39 = arith.constant 0 : index
      %c0_40 = arith.constant 0 : index
      %59 = vector.load %arg9[%c0_39, %c0_40] : memref<8x1xf32, #tpu.memory_space<vmem>>, vector<8x1xf32>
      tpu.vector_store %arg9[%c0_39, %c0_40], %58 {strides = array<i32>} : memref<8x1xf32, #tpu.memory_space<vmem>>, vector<8x1xf32>,
      %c0_i32_41 = arith.constant 0 : i32
      %60 = vector.broadcast %c0_i32_41 : i32 to vector<8x1xi32>
      %c0_42 = arith.constant 0 : index
      %c0_43 = arith.constant 0 : index
      %61 = vector.load %arg10[%c0_42, %c0_43] : memref<8x1xi32, #tpu.memory_space<vmem>>, vector<8x1xi32>
      tpu.vector_store %arg10[%c0_42, %c0_43], %60 {strides = array<i32>} : memref<8x1xi32, #tpu.memory_space<vmem>>, vector<8x1xi32>,
    } else {
    }
    %c0 = arith.constant 0 : index
    %c0_1 = arith.constant 0 : index
    %3 = vector.load %arg2[%c0, %c0_1] : memref<8x128xbf16, #tpu.memory_space<vmem>>, vector<8x128xbf16>
    %c0_2 = arith.constant 0 : index
    %c0_3 = arith.constant 0 : index
    %4 = vector.load %arg3[%c0_2, %c0_3] : memref<128x128xbf16, #tpu.memory_space<vmem>>, vector<128x128xbf16>
    %cst = arith.constant dense<0.000000e+00> : vector<8x128xf32>
    %5 = tpu.matmul %3, %4, %cst {dimension_numbers = #tpu.dot_dimension_numbers<[1], [1], [0], [0], [0, 0, 1, 0], [], []>} : vector<8x128xbf16>, vector<128x128xbf16>, vector<8x128xf32> -> vector<8x128xf32>
    %c0_4 = arith.constant 0 : index
    %c0_5 = arith.constant 0 : index
    %6 = vector.load %arg4[%c0_4, %c0_5] : memref<1x128xf32, #tpu.memory_space<vmem>>, vector<1x128xf32>
    %7 = vector.broadcast %6 : vector<1x128xf32> to vector<8x128xf32>
    %8 = arith.addf %5, %7 : vector<8x128xf32>
    %c1_i32 = arith.constant 1 : i32
    %9 = arith.muli %arg0, %c1_i32 : i32
    %10 = arith.addi %9, %arg1 : i32
    %c128_i32 = arith.constant 128 : i32
    %11 = arith.muli %10, %c128_i32 : i32
    %12 = tpu.iota {dimensions = array<i32: 1>} : vector<8x128xi32>
    %13 = vector.broadcast %11 : i32 to vector<8x128xi32>
    %14 = arith.addi %13, %12 : vector<8x128xi32>
    %c0_6 = arith.constant 0 : index
    %c0_7 = arith.constant 0 : index
    %15 = vector.load %arg5[%c0_6, %c0_7] : memref<8x1xi32, #tpu.memory_space<vmem>>, vector<8x1xi32>
    %c0_8 = arith.constant 0 : index
    %c0_9 = arith.constant 0 : index
    %16 = vector.load %arg9[%c0_8, %c0_9] : memref<8x1xf32, #tpu.memory_space<vmem>>, vector<8x1xf32>
    %17 = vector.broadcast %15 : vector<8x1xi32> to vector<8x128xi32>
    %18 = arith.cmpi eq, %14, %17 : vector<8x128xi32>
    %cst_10 = arith.constant 0.000000e+00 : f32
    %19 = vector.broadcast %cst_10 : f32 to vector<8x128xf32>
    %20 = arith.select %18, %8, %19 : vector<8x128xi1>, vector<8x128xf32>
    %cst_11 = arith.constant dense<0.000000e+00> : vector<8xf32>
    %21 = vector.multi_reduction <add>, %20, %cst_11 [1] : vector<8x128xf32> to vector<8xf32>
    %22 = vector.shape_cast %21 : vector<8xf32> to vector<8x1xf32>
    %23 = arith.addf %16, %22 : vector<8x1xf32>
    %c0_12 = arith.constant 0 : index
    %c0_13 = arith.constant 0 : index
    %24 = vector.load %arg9[%c0_12, %c0_13] : memref<8x1xf32, #tpu.memory_space<vmem>>, vector<8x1xf32>
    tpu.vector_store %arg9[%c0_12, %c0_13], %23 {strides = array<i32>} : memref<8x1xf32, #tpu.memory_space<vmem>>, vector<8x1xf32>,
    %cst_14 = arith.constant dense<0xFF800000> : vector<8xf32>
    %25 = vector.multi_reduction <maximumf>, %8, %cst_14 [1] : vector<8x128xf32> to vector<8xf32>
    %26 = vector.shape_cast %25 : vector<8xf32> to vector<8x1xf32>
    %27 = vector.broadcast %26 : vector<8x1xf32> to vector<8x128xf32>
    %28 = arith.cmpf oeq, %8, %27 : vector<8x128xf32>
    %c128_i32_15 = arith.constant 128 : i32
    %29 = vector.broadcast %c128_i32_15 : i32 to vector<8x128xi32>
    %30 = arith.select %28, %14, %29 : vector<8x128xi1>, vector<8x128xi32>
    %cst_16 = arith.constant dense<2147483647> : vector<8xi32>
    %31 = vector.multi_reduction <minsi>, %30, %cst_16 [1] : vector<8x128xi32> to vector<8xi32>
    %32 = vector.shape_cast %31 : vector<8xi32> to vector<8x1xi32>
    %c0_17 = arith.constant 0 : index
    %c0_18 = arith.constant 0 : index
    %33 = vector.load %arg7[%c0_17, %c0_18] : memref<8x1xf32, #tpu.memory_space<vmem>>, vector<8x1xf32>
    %34 = arith.cmpf ogt, %26, %33 : vector<8x1xf32>
    %c0_19 = arith.constant 0 : index
    %c0_20 = arith.constant 0 : index
    %35 = vector.load %arg10[%c0_19, %c0_20] : memref<8x1xi32, #tpu.memory_space<vmem>>, vector<8x1xi32>
    %36 = arith.select %34, %32, %35 : vector<8x1xi1>, vector<8x1xi32>
    %c0_21 = arith.constant 0 : index
    %c0_22 = arith.constant 0 : index
    %37 = vector.load %arg10[%c0_21, %c0_22] : memref<8x1xi32, #tpu.memory_space<vmem>>, vector<8x1xi32>
    tpu.vector_store %arg10[%c0_21, %c0_22], %36 {strides = array<i32>} : memref<8x1xi32, #tpu.memory_space<vmem>>, vector<8x1xi32>,
    %38 = arith.maximumf %33, %26 : vector<8x1xf32>
    %39 = arith.subf %33, %38 : vector<8x1xf32>
    %40 = math.exp %39 : vector<8x1xf32>
    %c0_23 = arith.constant 0 : index
    %c0_24 = arith.constant 0 : index
    %41 = vector.load %arg8[%c0_23, %c0_24] : memref<8x1xf32, #tpu.memory_space<vmem>>, vector<8x1xf32>
    %42 = arith.mulf %40, %41 : vector<8x1xf32>
    %43 = vector.broadcast %38 : vector<8x1xf32> to vector<8x128xf32>
    %44 = arith.subf %8, %43 : vector<8x128xf32>
    %45 = math.exp %44 : vector<8x128xf32>
    %cst_25 = arith.constant dense<0.000000e+00> : vector<8xf32>
    %46 = vector.multi_reduction <add>, %45, %cst_25 [1] : vector<8x128xf32> to vector<8xf32>
    %47 = vector.shape_cast %46 : vector<8xf32> to vector<8x1xf32>
    %48 = arith.addf %42, %47 : vector<8x1xf32>
    %c0_26 = arith.constant 0 : index
    %c0_27 = arith.constant 0 : index
    %49 = vector.load %arg8[%c0_26, %c0_27] : memref<8x1xf32, #tpu.memory_space<vmem>>, vector<8x1xf32>
    tpu.vector_store %arg8[%c0_26, %c0_27], %48 {strides = array<i32>} : memref<8x1xf32, #tpu.memory_space<vmem>>, vector<8x1xf32>,
    %c0_28 = arith.constant 0 : index
    %c0_29 = arith.constant 0 : index
    %50 = vector.load %arg7[%c0_28, %c0_29] : memref<8x1xf32, #tpu.memory_space<vmem>>, vector<8x1xf32>
    tpu.vector_store %arg7[%c0_28, %c0_29], %38 {strides = array<i32>} : memref<8x1xf32, #tpu.memory_space<vmem>>, vector<8x1xf32>,
    %c0_i32_30 = arith.constant 0 : i32
    %51 = arith.cmpi eq, %arg1, %c0_i32_30 : i32
    %52 = arith.extui %51 : i1 to i32
    %c0_i32_31 = arith.constant 0 : i32
    %53 = arith.cmpi ne, %52, %c0_i32_31 : i32
    scf.if %53 {
      %54 = tpu.iota {dimensions = array<i32: 1>} : vector<8x128xi32>
      %c0_i32_32 = arith.constant 0 : i32
      %55 = vector.broadcast %c0_i32_32 : i32 to vector<8x128xi32>
      %56 = arith.cmpi eq, %54, %55 : vector<8x128xi32>
      %c0_33 = arith.constant 0 : index
      %c0_34 = arith.constant 0 : index
      %57 = vector.load %arg7[%c0_33, %c0_34] : memref<8x1xf32, #tpu.memory_space<vmem>>, vector<8x1xf32>
      %c1_i32_35 = arith.constant 1 : i32
      %58 = vector.broadcast %c1_i32_35 : i32 to vector<8x128xi32>
      %59 = arith.cmpi eq, %54, %58 : vector<8x128xi32>
      %c0_36 = arith.constant 0 : index
      %c0_37 = arith.constant 0 : index
      %60 = vector.load %arg8[%c0_36, %c0_37] : memref<8x1xf32, #tpu.memory_space<vmem>>, vector<8x1xf32>
      %c2_i32 = arith.constant 2 : i32
      %61 = vector.broadcast %c2_i32 : i32 to vector<8x128xi32>
      %62 = arith.cmpi eq, %54, %61 : vector<8x128xi32>
      %c0_38 = arith.constant 0 : index
      %c0_39 = arith.constant 0 : index
      %63 = vector.load %arg9[%c0_38, %c0_39] : memref<8x1xf32, #tpu.memory_space<vmem>>, vector<8x1xf32>
      %c3_i32 = arith.constant 3 : i32
      %64 = vector.broadcast %c3_i32 : i32 to vector<8x128xi32>
      %65 = arith.cmpi eq, %54, %64 : vector<8x128xi32>
      %c0_40 = arith.constant 0 : index
      %c0_41 = arith.constant 0 : index
      %66 = vector.load %arg10[%c0_40, %c0_41] : memref<8x1xi32, #tpu.memory_space<vmem>>, vector<8x1xi32>
      %67 = arith.sitofp %66 : vector<8x1xi32> to vector<8x1xf32>
      %cst_42 = arith.constant 0.000000e+00 : f32
      %68 = vector.shape_cast %67 : vector<8x1xf32> to vector<8x1xf32>
      %69 = vector.broadcast %68 : vector<8x1xf32> to vector<8x128xf32>
      %70 = vector.broadcast %cst_42 : f32 to vector<8x128xf32>
      %71 = arith.select %65, %69, %70 : vector<8x128xi1>, vector<8x128xf32>
      %72 = vector.shape_cast %63 : vector<8x1xf32> to vector<8x1xf32>
      %73 = vector.broadcast %72 : vector<8x1xf32> to vector<8x128xf32>
      %74 = arith.select %62, %73, %71 : vector<8x128xi1>, vector<8x128xf32>
      %75 = vector.shape_cast %60 : vector<8x1xf32> to vector<8x1xf32>
      %76 = vector.broadcast %75 : vector<8x1xf32> to vector<8x128xf32>
      %77 = arith.select %59, %76, %74 : vector<8x128xi1>, vector<8x128xf32>
      %78 = vector.shape_cast %57 : vector<8x1xf32> to vector<8x1xf32>
      %79 = vector.broadcast %78 : vector<8x1xf32> to vector<8x128xf32>
      %80 = arith.select %56, %79, %77 : vector<8x128xi1>, vector<8x128xf32>
      %c0_43 = arith.constant 0 : index
      %c0_44 = arith.constant 0 : index
      %c0_45 = arith.constant 0 : index
      %81 = vector.load %arg6[%c0_43, %c0_44, %c0_45] : memref<1x8x128xf32, #tpu.memory_space<vmem>>, vector<1x8x128xf32>
      %82 = vector.shape_cast %81 : vector<1x8x128xf32> to vector<8x128xf32>
      %83 = vector.shape_cast %80 : vector<8x128xf32> to vector<1x8x128xf32>
      tpu.vector_store %arg6[%c0_43, %c0_44, %c0_45], %83 {strides = array<i32>} : memref<1x8x128xf32, #tpu.memory_space<vmem>>, vector<1x8x128xf32>,
    } else {
    }
    return
  }
  func.func @transform_0(%arg0: i32, %arg1: i32) -> (i32, i32) {
    %c0_i32 = arith.constant 0 : i32
    %c0_i32_0 = arith.constant 0 : i32
    %c0_i32_1 = arith.constant 0 : i32
    return %c0_i32, %c0_i32_0 : i32, i32
  }
  func.func @transform_1(%arg0: i32, %arg1: i32) -> (i32, i32) {
    %c1_i32 = arith.constant 1 : i32
    %0 = arith.muli %arg0, %c1_i32 : i32
    %1 = arith.addi %0, %arg1 : i32
    %c0_i32 = arith.constant 0 : i32
    %2 = arith.minsi %1, %c0_i32 : i32
    %c0_i32_0 = arith.constant 0 : i32
    %c0_i32_1 = arith.constant 0 : i32
    return %2, %c0_i32_0 : i32, i32
  }
  func.func @transform_2(%arg0: i32, %arg1: i32) -> (i32, i32) {
    %c1_i32 = arith.constant 1 : i32
    %0 = arith.muli %arg0, %c1_i32 : i32
    %1 = arith.addi %0, %arg1 : i32
    %c0_i32 = arith.constant 0 : i32
    %2 = arith.minsi %1, %c0_i32 : i32
    %c0_i32_0 = arith.constant 0 : i32
    %c0_i32_1 = arith.constant 0 : i32
    return %c0_i32_0, %2 : i32, i32
  }
  func.func @transform_3(%arg0: i32, %arg1: i32) -> (i32, i32) {
    %c0_i32 = arith.constant 0 : i32
    %c0_i32_0 = arith.constant 0 : i32
    %c0_i32_1 = arith.constant 0 : i32
    return %c0_i32, %c0_i32_0 : i32, i32
  }
  func.func @transform_4(%arg0: i32, %arg1: i32) -> (i32, i32, i32) {
    %c0_i32 = arith.constant 0 : i32
    %c0_i32_0 = arith.constant 0 : i32
    %c0_i32_1 = arith.constant 0 : i32
    return %arg0, %c0_i32, %c0_i32_0 : i32, i32, i32
  }
}

</mosaic_0001>

<llo_original>
// kernel: loss_function_forward.1
$region0: #{loss_function_forward.1}
  #allocation0 [shape = 'u32[]', space=smem, size = 0x4, offset = 0x4, fixed_abs, tag = 'smem constant byte address 0x4 - core index']
  #allocation1 [shape = 'u32[144,128]{1,0:T(1,128)}', space=vmem, size = 0x12000, scoped, tag = 'internal scratch']
  #allocation2 [shape = 'f32[8,1]{1,0:T(8,128)}', space=vmem, size = 0x1000, scoped, tag = 'scratch operand']
  #allocation3 [shape = 'f32[8,1]{1,0:T(8,128)}', space=vmem, size = 0x1000, scoped, tag = 'scratch operand']
  #allocation4 [shape = 'f32[8,1]{1,0:T(8,128)}', space=vmem, size = 0x1000, scoped, tag = 'scratch operand']
  #allocation5 [shape = 's32[8,1]{1,0:T(8,128)}', space=vmem, size = 0x1000, scoped, tag = 'scratch operand']
  %s0 = inlined_call_operand.vmem [shape: bf16[8,128], index: 0, kind: input, shape index: {}]
  %s1 = inlined_call_operand.vmem [shape: bf16[128,128], index: 1, kind: input, shape index: {}]
  %s2 = inlined_call_operand.vmem [shape: f32[1,128], index: 2, kind: input, shape index: {}]
  %s3 = inlined_call_operand.vmem [shape: s32[8,1], index: 3, kind: input, shape index: {}]
  %s4 = inlined_call_operand.vmem [shape: f32[1,8,128], index: 4, kind: output, shape index: {}]
  %s5 = sld [smem:[#allocation0]]
  $region34: #{loss_function_forward.1} parent=0
    _
  %s7 = ssub.s32 1, %s5
  %s8 = scalar_select 0, %s7, %s5
  // Predicated region
  $region2: #{loss_function_forward.1} parent=0 // pred_check
    _
  $region3: #{loss_function_forward.1} parent=0 // pred_check_branch
    %10 = sbr.rel (0) target = $region5
  $region4: #{loss_function_forward.1} parent=0 // pred_region
    _
  $region5: #{loss_function_forward.1} parent=0 // pred_fallthru
    _
  // Predicated region
  $region6: #{loss_function_forward.1} parent=0 // pred_check
    _
  $region7: #{loss_function_forward.1} parent=0 // pred_check_branch
    %12 = sbr.rel (0) target = $region9
  $region8: #{loss_function_forward.1} parent=0 // pred_region
    %s13 = sadd.s32 0, 0
    %p14 = scmp.lt.s32.totalorder %s13, 0
    %s15 = scalar_select %p14, %s13, 0
    %s16 = smul.u32 16, %s15
    %p17 = scmp.lt.s32.totalorder %s16, 15
    %s18 = scalar_select %p17, %s16, 15
    %s19 = smul.addr %s18, 4
    %s20 = scalar_lea.vmem %s1, %s19
    %s21 = sadd.s32 0, 0
    %p22 = scmp.lt.s32.totalorder %s21, 0
    %s23 = scalar_select %p22, %s21, 0
    %s24 = smul.u32 16, %s23
  $region9: #{loss_function_forward.1} parent=0 // pred_fallthru
    _
  // Predicated region
  $region10: #{loss_function_forward.1} parent=0 // pred_check
    _
  $region11: #{loss_function_forward.1} parent=0 // pred_check_branch
    %26 = sbr.rel (0) target = $region13
  $region12: #{loss_function_forward.1} parent=0 // pred_region
    %s27 = sadd.s32 0, 0
    %p28 = scmp.lt.s32.totalorder %s27, 0
    %s29 = scalar_select %p28, %s27, 0
    %p30 = scmp.lt.s32.totalorder %s29, 0
    %s31 = scalar_select %p30, %s29, 0
    %s32 = scalar_lea.vmem %s2, %s31
    %s33 = sadd.s32 0, 0
    %p34 = scmp.lt.s32.totalorder %s33, 0
    %s35 = scalar_select %p34, %s33, 0
  $region13: #{loss_function_forward.1} parent=0 // pred_fallthru
    _
  // Predicated region
  $region14: #{loss_function_forward.1} parent=0 // pred_check
    _
  $region15: #{loss_function_forward.1} parent=0 // pred_check_branch
    %37 = sbr.rel (0) target = $region17
  $region16: #{loss_function_forward.1} parent=0 // pred_region
    _
  $region17: #{loss_function_forward.1} parent=0 // pred_fallthru
    _
  %s38 = sadd.s32 0, 0
  %p39 = scmp.lt.s32.totalorder %s38, 0
  %s40 = scalar_select %p39, %s38, 0
  %s41 = smul.u32 16, %s40
  %p42 = scmp.lt.s32.totalorder %s41, 15
  %s43 = scalar_select %p42, %s41, 15
  %s44 = smul.addr %s43, 4
  %s45 = scalar_lea.vmem %s1, %s44
  %s46 = sadd.s32 0, 0
  %p47 = scmp.lt.s32.totalorder %s46, 0
  %s48 = scalar_select %p47, %s46, 0
  %p49 = scmp.lt.s32.totalorder %s48, 0
  %s50 = scalar_select %p49, %s48, 0
  %s51 = scalar_lea.vmem %s2, %s50
  %s52 = sadd.s32 0, 0
  %p53 = scmp.lt.s32.totalorder %s52, 0
  %s54 = scalar_select %p53, %s52, 0
  %s55 = smul.u32 16, %s54
  %p56 = scmp.lt.s32.totalorder %s55, 15
  %s57 = scalar_select %p56, %s55, 15
  %s58 = smul.addr %s57, 4
  %s59 = scalar_lea.vmem %s1, %s58
  %s60 = sadd.s32 0, 0
  %p61 = scmp.lt.s32.totalorder %s60, 0
  %s62 = scalar_select %p61, %s60, 0
  %s63 = smul.u32 16, %s62
  %s64 = sadd.s32 0, 0
  %p65 = scmp.lt.s32.totalorder %s64, 0
  %s66 = scalar_select %p65, %s64, 0
  %p67 = scmp.lt.s32.totalorder %s66, 0
  %s68 = scalar_select %p67, %s66, 0
  %s69 = scalar_lea.vmem %s2, %s68
  %s70 = sadd.s32 0, 0
  %p71 = scmp.lt.s32.totalorder %s70, 0
  %s72 = scalar_select %p71, %s70, 0
  %p74 = scmp.eq.s32.totalorder 0, 0
  // Predicated region
  $region18: #{loss_function_forward.1} parent=0 // pred_check
    %p75 = pneg %p74
  $region19: #{loss_function_forward.1} parent=0 // pred_check_branch
    %77 = sbr.rel (%p75) target = $region21
  $region20: #{loss_function_forward.1} parent=0 // pred_region
    %vm78 = vcmask 7168
    %79 = vst.msk [vmem:[#allocation2] sm:$0xff] %vm78, -inf
    %80 = vst.msk [vmem:[#allocation3] sm:$0xff] %vm78, 0.0
    %81 = vst.msk [vmem:[#allocation4] sm:$0xff] %vm78, 0.0
    %82 = vst.msk [vmem:[#allocation5] sm:$0xff] %vm78, 0
  $region21: #{loss_function_forward.1} parent=0 // pred_fallthru
    _
  %v83 = vld [vmem:[%s0] sm:$0xf]
  %v84 = vld [vmem:[%s59] sm:$0xf]
  %v85 = vld [vmem:[%s59 + $0x4] sm:$0xf]
  %v86 = vld [vmem:[%s59 + $0x8] sm:$0xf]
  %v87 = vld [vmem:[%s59 + $0xc] sm:$0xf]
  %v88 = vld [vmem:[%s59 + $0x10] sm:$0xf]
  %v89 = vld [vmem:[%s59 + $0x14] sm:$0xf]
  %v90 = vld [vmem:[%s59 + $0x18] sm:$0xf]
  %v91 = vld [vmem:[%s59 + $0x1c] sm:$0xf]
  %v92 = vld [vmem:[%s59 + $0x20] sm:$0xf]
  %v93 = vld [vmem:[%s59 + $0x24] sm:$0xf]
  %v94 = vld [vmem:[%s59 + $0x28] sm:$0xf]
  %v95 = vld [vmem:[%s59 + $0x2c] sm:$0xf]
  %v96 = vld [vmem:[%s59 + $0x30] sm:$0xf]
  %v97 = vld [vmem:[%s59 + $0x34] sm:$0xf]
  %v98 = vld [vmem:[%s59 + $0x38] sm:$0xf]
  %v99 = vld [vmem:[%s59 + $0x3c] sm:$0xf]
  %v100 = vld [vmem:[%s69] sm:$0x1]
  %v102 = vlaneseq
  %v103 = vshrl.u32 %v102, 7
  %v104 = vsub.s32 0, %v103
  %v105 = vrot.slane %v100, %v104
  %v123 = vunpack.c.l.b16 %v84
  %v124 = vunpack.c.l.b16 %v85
  %v125 = vunpack.c.l.b16 %v86
  %v126 = vunpack.c.l.b16 %v87
  %v127 = vunpack.c.l.b16 %v88
  %v128 = vunpack.c.l.b16 %v89
  %v129 = vunpack.c.l.b16 %v90
  %v130 = vunpack.c.l.b16 %v91
  %v131 = vunpack.c.l.b16 %v92
  %v132 = vunpack.c.l.b16 %v93
  %v133 = vunpack.c.l.b16 %v94
  %v134 = vunpack.c.l.b16 %v95
  %v135 = vunpack.c.l.b16 %v96
  %v136 = vunpack.c.l.b16 %v97
  %v137 = vunpack.c.l.b16 %v98
  %v138 = vunpack.c.l.b16 %v99
  %v139 = vpack.c.b16 %v124, %v123
  %v140 = vpack.c.b16 %v126, %v125
  %v141 = vpack.c.b16 %v128, %v127
  %v142 = vpack.c.b16 %v130, %v129
  %v143 = vpack.c.b16 %v132, %v131
  %v144 = vpack.c.b16 %v134, %v133
  %v145 = vpack.c.b16 %v136, %v135
  %v146 = vpack.c.b16 %v138, %v137
  %155 = vmatprep.subr.bf16.mxu0 0
  %156 = vmatpush1.bf16.xpose.msra.mxu0 %v139
  %157 = vmatprep.subr.bf16.mxu0 0
  %158 = vmatpush1.bf16.xpose.msra.mxu0 %v140
  %159 = vmatprep.subr.bf16.mxu0 0
  %160 = vmatpush1.bf16.xpose.msra.mxu0 %v141
  %161 = vmatprep.subr.bf16.mxu0 0
  %162 = vmatpush1.bf16.xpose.msra.mxu0 %v142
  %163 = vmatprep.subr.bf16.mxu0 0
  %164 = vmatpush1.bf16.xpose.msra.mxu0 %v143
  %165 = vmatprep.subr.bf16.mxu0 0
  %166 = vmatpush1.bf16.xpose.msra.mxu0 %v144
  %167 = vmatprep.subr.bf16.mxu0 0
  %168 = vmatpush1.bf16.xpose.msra.mxu0 %v145
  %169 = vmatprep.subr.bf16.mxu0 0
  %170 = vmatpush1.bf16.xpose.msra.mxu0 %v146
  %171 = vmatprep.subr.bf16.mxu0 0
  %172 = vmatpush1.bf16.xpose.msra.mxu0 0
  %173 = vmatprep.subr.bf16.mxu0 0
  %174 = vmatpush1.bf16.xpose.msra.mxu0 0
  %175 = vmatprep.subr.bf16.mxu0 0
  %176 = vmatpush1.bf16.xpose.msra.mxu0 0
  %177 = vmatprep.subr.bf16.mxu0 0
  %178 = vmatpush1.bf16.xpose.msra.mxu0 0
  %179 = vmatprep.subr.bf16.mxu0 0
  %180 = vmatpush1.bf16.xpose.msra.mxu0 0
  %181 = vmatprep.subr.bf16.mxu0 0
  %182 = vmatpush1.bf16.xpose.msra.mxu0 0
  %183 = vmatprep.subr.bf16.mxu0 0
  %184 = vmatpush1.bf16.xpose.msra.mxu0 0
  %185 = vmatprep.subr.bf16.mxu0 0
  %186 = vmatpush1.bf16.xpose.msra.mxu0 0
  %187 = vmatprep.mubr.bf16.mxu0 0
  %188 = vmatmul.mubr.bf16.gmra.mrb[0].mxu0 %v83
  %v189 = vpop.f32.mrb[0].mxu0
  %v190 = vadd.f32 %v105, %v189
  %v191 = vpop.f32.mrb[0].mxu0
  %v192 = vpop.f32.mrb[0].mxu0
  %v193 = vpop.f32.mrb[0].mxu0
  %194 = vdwg.mxu0
  %s195 = sadd.s32 0, 0
  %s196 = smul.u32 %s195, 128
  %v197 = vlaneseq
  %v198 = vand.u32 %v197, 127
  %v199 = vstv %s196
  %v200 = vadd.s32 %v199, %v198
  %v201 = vld [vmem:[%s3] sm:$0xff]
  %v202 = vld [vmem:[#allocation4] sm:$0xff]
  %203 = vset.pattern.permute.xlu0 0
  %204 = vperm.xlu0 %203, %v201
  %v205 = vpop.permute.xlu0 %204
  %vm206 = vcmp.eq.s32.totalorder %v200, %v205
  %v207 = vsel %vm206, %v190, 0.0
  %208 = vadd.xlane.f32.xlu0 %v207
  %v209 = vpop.xlane.xlu0 %208
  %v210 = vadd.f32 %v202, %v209
  %vm211 = vcmask 7168
  %212 = vst.msk [vmem:[#allocation4] sm:$0xff] %vm211, %v210
  %213 = vmax.xlane.f32.xlu0 %v190
  %v214 = vpop.xlane.xlu0 %213
  %vm215 = vcmp.eq.f32.partialorder %v190, %v214
  %v216 = vsel %vm215, %v200, 128
  %v217 = vand.u32 %v216, 65535
  %v218 = vshra.s32 %v216, 16
  %v219 = vcvt.s32.f32 %v217
  %v220 = vcvt.s32.f32 %v218
  %221 = vmin.xlane.f32.xlu0 %v220
  %v222 = vpop.xlane.xlu0 %221
  %vm223 = vcmp.eq.f32.partialorder %v220, %v222
  %v224 = vsel %vm223, %v219, inf
  %225 = vmin.xlane.f32.xlu0 %v224
  %v226 = vpop.xlane.xlu0 %225
  %v227 = vcvt.f32.s32 %v226
  %v228 = vcvt.f32.s32 %v222
  %v229 = vshll.u32 %v228, 16
  %v230 = vadd.s32 %v229, %v227
  %v231 = vld [vmem:[#allocation2] sm:$0xff]
  %vm232 = vcmp.gt.f32.partialorder %v214, %v231
  %v233 = vld [vmem:[#allocation5] sm:$0xff]
  %v234 = vsel %vm232, %v230, %v233
  %235 = vst.msk [vmem:[#allocation5] sm:$0xff] %vm211, %v234
  %v236 = vmax.f32 %v231, %v214
  %v237 = vsub.f32 %v231, %v236
  %v238 = vmul.f32 %v237, 1.442695
  %v239 = vpow.pop %v238
  %v240 = vld [vmem:[#allocation3] sm:$0xff]
  %v241 = vmul.f32 %v239, %v240
  %243 = vset.pattern.permute.xlu0 0
  %244 = vperm.xlu0 %243, %v236
  %v245 = vpop.permute.xlu0 %244
  %v247 = vsub.f32 %v190, %v245
  %v248 = vmul.f32 %v247, 1.442695
  %v249 = vpow.pop %v248
  %250 = vadd.xlane.f32.xlu0 %v249
  %v251 = vpop.xlane.xlu0 %250
  %v252 = vadd.f32 %v241, %v251
  %253 = vst.msk [vmem:[#allocation3] sm:$0xff] %vm211, %v252
  %254 = vst.msk [vmem:[#allocation2] sm:$0xff] %vm211, %v236
  // Predicated region
  $region22: #{loss_function_forward.1} parent=0 // pred_check
    %p255 = pneg %p74
  $region23: #{loss_function_forward.1} parent=0 // pred_check_branch
    %257 = sbr.rel (%p255) target = $region25
  $region24: #{loss_function_forward.1} parent=0 // pred_region
    %vm258 = vcmp.eq.s32.totalorder %v198, 0
    %v259 = vld [vmem:[#allocation2] sm:$0xff]
    %vm260 = vcmp.eq.s32.totalorder %v198, 1
    %v261 = vld [vmem:[#allocation3] sm:$0xff]
    %vm262 = vcmp.eq.s32.totalorder %v198, 2
    %v263 = vld [vmem:[#allocation4] sm:$0xff]
    %vm264 = vcmp.eq.s32.totalorder %v198, 3
    %v265 = vld [vmem:[#allocation5] sm:$0xff]
    %v266 = vcvt.s32.f32 %v265
    %268 = vset.pattern.permute.xlu0 0
    %269 = vperm.xlu0 %268, %v266
    %v270 = vpop.permute.xlu0 %269
    %v272 = vsel %vm264, %v270, 0.0
    %274 = vset.pattern.permute.xlu0 0
    %275 = vperm.xlu0 %274, %v263
    %v276 = vpop.permute.xlu0 %275
    %v278 = vsel %vm262, %v276, %v272
    %280 = vset.pattern.permute.xlu0 0
    %281 = vperm.xlu0 %280, %v261
    %v282 = vpop.permute.xlu0 %281
    %v284 = vsel %vm260, %v282, %v278
    %286 = vset.pattern.permute.xlu0 0
    %287 = vperm.xlu0 %286, %v259
    %v288 = vpop.permute.xlu0 %287
    %v290 = vsel %vm258, %v288, %v284
    %291 = vst [vmem:[%s4] sm:$0xff] %v290
  $region25: #{loss_function_forward.1} parent=0 // pred_fallthru
    _
  // Predicated region
  $region26: #{loss_function_forward.1} parent=0 // pred_check
    _
  $region27: #{loss_function_forward.1} parent=0 // pred_check_branch
    %293 = sbr.rel (0) target = $region29
  $region28: #{loss_function_forward.1} parent=0 // pred_region
    _
  $region29: #{loss_function_forward.1} parent=0 // pred_fallthru
    _
  // Predicated region
  $region30: #{loss_function_forward.1} parent=0 // pred_check
    _
  $region31: #{loss_function_forward.1} parent=0 // pred_check_branch
    %295 = sbr.rel (0) target = $region33
  $region32: #{loss_function_forward.1} parent=0 // pred_region
    _
  $region33: #{loss_function_forward.1} parent=0 // pred_fallthru
    _

</llo_original>
